<compile_context>
chip_gen: v6e
topology: v6e:2x2x1
jax: 0.10.0
libtpu: 0.0.40
codegen_flags: <defaults>
</compile_context>

<pallas_src>
import jax
import jax.numpy as jnp
from jax.experimental import pallas as pl
from jax.experimental.pallas import tpu as pltpu

LANE = 128          # lane width of a vreg (last-dim padding granularity)
ROW_ALIGN = 16      # bf16 packs (16, 128) per vreg -> align batch rows to 16
NEG_FILL = -1e30    # bias fill for padded class columns -> exp() == 0


def _round_up(n, m):
    return ((n + m - 1) // m) * m


def _cdiv(a, b):
    return (a + b - 1) // b


def _make_mlp_kernel(n_layers, compute_dtype):
    """Fused kernel: (x, W0, b0, ..., W_{L-1}, b_{L-1}, out_ref).

    Layers 0..L-2 are Linear+ReLU; layer L-1 is Linear followed by a row-wise
    (dim=1) numerically-stable softmax, all on one batch tile.
    """

    def kernel(*refs):
        x_ref = refs[0]
        out_ref = refs[-1]
        h = x_ref[...]  # already compute_dtype (bf16) from the wrapper
        for li in range(n_layers):
            w_ref = refs[1 + 2 * li]
            b_ref = refs[2 + 2 * li]
            # MXU matmul, bf16 inputs, f32 accumulation.
            h = jnp.dot(h.astype(compute_dtype), w_ref[...],
                        preferred_element_type=jnp.float32)
            h = h + b_ref[...]            # f32 bias add (VPU)
            if li < n_layers - 1:
                h = jnp.maximum(h, 0.0)   # ReLU on hidden layers only
        # Numerically-stable softmax along dim=1 (padded class cols are -1e30
        # pre-softmax, so they contribute exactly 0 to the denominator).
        m = jnp.max(h, axis=1, keepdims=True)
        e = jnp.exp(h - m)
        denom = jnp.sum(e, axis=1, keepdims=True)
        # approx reciprocal runs on the EUP slot (idle after the exp).
        out_ref[...] = (e * pl.reciprocal(denom, approx=True)).astype(out_ref.dtype)

    return kernel


def _pad_params(params, compute_dtype):
    """Zero-pad every Linear to lane-multiple (128) in/out dims.

    Hidden-layer bias padding is 0 (ReLU(0) == 0, and the next layer's padded
    weight rows are 0, so padding is exact).  Output-layer bias padding is
    NEG_FILL so padded class logits softmax to exactly 0.
    """
    n = len(params)
    padded = []
    for i, (w, b) in enumerate(params):
        fin, fout = w.shape
        fin_p = _round_up(fin, LANE)
        fout_p = _round_up(fout, LANE)
        w_p = jnp.zeros((fin_p, fout_p), compute_dtype)
        w_p = w_p.at[:fin, :fout].set(w.astype(compute_dtype))
        fill = NEG_FILL if i == n - 1 else 0.0
        b_p = jnp.full((1, fout_p), fill, jnp.float32)
        b_p = b_p.at[:, :fout].set(b.reshape(1, -1).astype(jnp.float32))
        padded.append((w_p, b_p))
    return padded


def _choose_batch_tiling(B, tb, *, min_tiles=2, min_rows_per_tile=64):
    """Balanced batch tiling: n_tiles tiles of (near-)equal, 16-aligned size.

    Forces >=2 tiles when the batch is big enough so v7x megacore sharding of
    the "parallel" batch axis is not a no-op (harmless on v5e/v6e).
    """
    n_tiles = max(1, _cdiv(B, tb))
    if n_tiles < min_tiles and B >= min_tiles * min_rows_per_tile:
        n_tiles = min_tiles
    TB = _round_up(_cdiv(B, n_tiles), ROW_ALIGN)
    return TB, TB * n_tiles, n_tiles


def _vmem_limit_bytes(padded, TB, F_pad, C_pad, compute_dtype, out_dtype):
    """Resident-VMEM budget with a generation-aware clamp.

    Weights/biases are single-buffered (pl.Buffered(1)); x/out are 2-deep
    pipelined; intermediates kept in f32.
    """
    weight_bytes = sum(w.size * w.dtype.itemsize + b.size * b.dtype.itemsize
                       for w, b in padded)
    in_isz = jnp.dtype(compute_dtype).itemsize
    out_isz = jnp.dtype(out_dtype).itemsize
    io_bytes = 2 * TB * F_pad * in_isz + 2 * TB * C_pad * out_isz
    max_dim = max([F_pad, C_pad] + [w.shape[1] for w, _ in padded])
    act_bytes = 4 * TB * max_dim * 4  # f32 intermediates / spill headroom
    want = 2 * (weight_bytes + io_bytes + act_bytes)

    # Generation-aware clamp: v7x has 64 MiB VMEM per TC, v5e/v6e have 128 MiB.
    try:
        cap = int(pltpu.get_tpu_info().vmem_capacity_bytes)
    except Exception:
        cap = 64 << 20  # conservative (v7x-safe) fallback
    clamp = max(cap * 3 // 4, cap - (32 << 20))   # 48 MiB on v7x, ~96 MiB on v5e/v6e
    return int(min(max(want, 8 << 20), clamp))


def mlp_forward(x, params, *, tb=1024, compute_dtype=jnp.bfloat16,
                out_dtype=jnp.bfloat16):
    """x: [B, input_size]; params: list of (W [in,out], b [1,out]) per Linear."""
    B, F = x.shape
    n_layers = len(params)
    num_classes = params[-1][0].shape[1]

    padded = _pad_params(params, compute_dtype)
    F_pad = padded[0][0].shape[0]
    C_pad = padded[-1][0].shape[1]

    TB, B_pad, n_tiles = _choose_batch_tiling(B, tb)

    # Fast path: skip the extra HBM pad pass when the input is already aligned.
    if B_pad == B and F_pad == F and x.dtype == jnp.dtype(compute_dtype):
        x_in = x
    else:
        x_in = jnp.zeros((B_pad, F_pad), compute_dtype)
        x_in = x_in.at[:B, :F].set(x.astype(compute_dtype))

    flat_inputs = [x_in]
    for w, b in padded:
        flat_inputs.append(w)
        flat_inputs.append(b)

    # x / out are tiled over the batch grid axis; weights & biases use a
    # constant index_map (fetched once, VMEM-resident) and are single-buffered.
    in_specs = [pl.BlockSpec((TB, F_pad), lambda i: (i, 0))]
    for w, b in padded:
        in_specs.append(pl.BlockSpec(w.shape, lambda i: (0, 0),
                                     pipeline_mode=pl.Buffered(1)))
        in_specs.append(pl.BlockSpec(b.shape, lambda i: (0, 0),
                                     pipeline_mode=pl.Buffered(1)))
    out_spec = pl.BlockSpec((TB, C_pad), lambda i: (i, 0))

    vmem_bytes = _vmem_limit_bytes(padded, TB, F_pad, C_pad, compute_dtype,
                                   out_dtype)

    out_pad = pl.pallas_call(
        _make_mlp_kernel(n_layers, compute_dtype),
        out_shape=jax.ShapeDtypeStruct((B_pad, C_pad), out_dtype),
        grid_spec=pltpu.PrefetchScalarGridSpec(
            num_scalar_prefetch=0,
            grid=(n_tiles,),
            in_specs=in_specs,
            out_specs=out_spec,
        ),
        compiler_params=pltpu.CompilerParams(
            dimension_semantics=("parallel",),   # megacore sharding on v7x
            vmem_limit_bytes=vmem_bytes,
        ),
    )(*flat_inputs)

    # Strip batch / class padding only when padding was actually added.
    if B_pad == B and C_pad == num_classes:
        return out_pad
    return out_pad[:B, :num_classes]


def init_mlp_params(key, input_size, hidden_sizes, num_classes):
    """Deterministic init mimicking PyTorch's default U(-1/sqrt(in), 1/sqrt(in))."""
    sizes = [input_size] + list(hidden_sizes) + [num_classes]
    params = []
    for i in range(len(sizes) - 1):
        fan_in, fan_out = sizes[i], sizes[i + 1]
        key, kw, kb = jax.random.split(key, 3)
        bound = 1.0 / (fan_in ** 0.5)
        w = jax.random.uniform(kw, (fan_in, fan_out), jnp.float32, -bound, bound)
        b = jax.random.uniform(kb, (1, fan_out), jnp.float32, -bound, bound)
        params.append((w, b))
    return params


def mlp_reference(x, params, compute_dtype=jnp.float32):
    """Pure-JAX reference; compute_dtype=bf16 mirrors the kernel's matmul casts."""
    h = x.astype(jnp.float32)
    n = len(params)
    for i, (w, b) in enumerate(params):
        h = jnp.dot(h.astype(compute_dtype), w.astype(compute_dtype),
                    preferred_element_type=jnp.float32) + b
        if i < n - 1:
            h = jnp.maximum(h, 0.0)
    return jax.nn.softmax(h, axis=1)


if __name__ == "__main__":
    key = jax.random.PRNGKey(0)
    key, kx = jax.random.split(key)

    # Small shapes consistent with the module: MLP(16, [32, 32], 4), batch=8.
    batch = 8
    input_size = 16
    hidden_sizes = [32, 32]
    num_classes = 4

    x = jax.random.normal(kx, (batch, input_size), jnp.float32)
    params = init_mlp_params(key, input_size, hidden_sizes, num_classes)

    fwd = jax.jit(mlp_forward)

    out = jax.block_until_ready(fwd(x, params)).astype(jnp.float32)
    assert out.shape == (batch, num_classes)

    ref_bf16 = mlp_reference(x, params, compute_dtype=jnp.bfloat16)
    ref_f32 = mlp_reference(x, params, compute_dtype=jnp.float32)
    assert jnp.allclose(out, ref_bf16, atol=1e-2), "mismatch vs bf16-matched reference"
    assert jnp.allclose(out, ref_f32, atol=5e-2), "mismatch vs f32 reference"
    assert jnp.allclose(jnp.sum(out, axis=1), 1.0, atol=1e-2), "softmax rows must sum to 1"

    # Larger, non-multiple batch exercises the balanced 2-tile grid + padding path.
    x2 = jax.random.normal(jax.random.PRNGKey(1), (300, input_size), jnp.float32)
    out2 = jax.block_until_ready(fwd(x2, params)).astype(jnp.float32)
    ref2 = mlp_reference(x2, params, compute_dtype=jnp.bfloat16)
    assert out2.shape == (300, num_classes)
    assert jnp.allclose(out2, ref2, atol=1e-2), "mismatch vs reference (tiled batch)"
    assert jnp.allclose(jnp.sum(out2, axis=1), 1.0, atol=1e-2), "softmax rows must sum to 1"

    print("KERNEL_OK")
</pallas_src>

<mosaic_0001>
module attributes {stable_mosaic.version = 11 : i64} {
  func.func @kernel(%arg0: i32, %arg1: memref<16x128xbf16, #tpu.memory_space<vmem>>, %arg2: memref<128x128xbf16, #tpu.memory_space<vmem>>, %arg3: memref<1x128xf32, #tpu.memory_space<vmem>>, %arg4: memref<128x128xbf16, #tpu.memory_space<vmem>>, %arg5: memref<1x128xf32, #tpu.memory_space<vmem>>, %arg6: memref<128x128xbf16, #tpu.memory_space<vmem>>, %arg7: memref<1x128xf32, #tpu.memory_space<vmem>>, %arg8: memref<16x128xbf16, #tpu.memory_space<vmem>>) attributes {dimension_semantics = [#tpu.dimension_semantics<parallel>], iteration_bounds = array<i64: 1>, scalar_prefetch = 0 : i64, scratch_operands = 0 : i64, tpu.core_type = #tpu.core_type<tc>, window_params = [{transform_indices = @transform_0, window_bounds = array<i64: 16, 128>}, {pipeline_mode = #tpu.pipeline_mode<synchronous>, transform_indices = @transform_1, window_bounds = array<i64: 128, 128>}, {pipeline_mode = #tpu.pipeline_mode<synchronous>, transform_indices = @transform_2, window_bounds = array<i64: 1, 128>}, {pipeline_mode = #tpu.pipeline_mode<synchronous>, transform_indices = @transform_3, window_bounds = array<i64: 128, 128>}, {pipeline_mode = #tpu.pipeline_mode<synchronous>, transform_indices = @transform_4, window_bounds = array<i64: 1, 128>}, {pipeline_mode = #tpu.pipeline_mode<synchronous>, transform_indices = @transform_5, window_bounds = array<i64: 128, 128>}, {pipeline_mode = #tpu.pipeline_mode<synchronous>, transform_indices = @transform_6, window_bounds = array<i64: 1, 128>}, {transform_indices = @transform_7, window_bounds = array<i64: 16, 128>}]} {
    %c0 = arith.constant 0 : index
    %c0_0 = arith.constant 0 : index
    %0 = vector.load %arg1[%c0, %c0_0] : memref<16x128xbf16, #tpu.memory_space<vmem>>, vector<16x128xbf16>
    %c0_1 = arith.constant 0 : index
    %c0_2 = arith.constant 0 : index
    %1 = vector.load %arg2[%c0_1, %c0_2] : memref<128x128xbf16, #tpu.memory_space<vmem>>, vector<128x128xbf16>
    %cst = arith.constant dense<0.000000e+00> : vector<16x128xf32>
    %2 = tpu.matmul %0, %1, %cst {dimension_numbers = #tpu.dot_dimension_numbers<[1], [0], [0], [1], [0, 0, 1, 1], [], []>} : vector<16x128xbf16>, vector<128x128xbf16>, vector<16x128xf32> -> vector<16x128xf32>
    %c0_3 = arith.constant 0 : index
    %c0_4 = arith.constant 0 : index
    %3 = vector.load %arg3[%c0_3, %c0_4] : memref<1x128xf32, #tpu.memory_space<vmem>>, vector<1x128xf32>
    %4 = vector.broadcast %3 : vector<1x128xf32> to vector<16x128xf32>
    %5 = arith.addf %2, %4 : vector<16x128xf32>
    %cst_5 = arith.constant 0.000000e+00 : f32
    %6 = vector.broadcast %cst_5 : f32 to vector<16x128xf32>
    %7 = arith.maximumf %5, %6 : vector<16x128xf32>
    %8 = arith.truncf %7 : vector<16x128xf32> to vector<16x128xbf16>
    %c0_6 = arith.constant 0 : index
    %c0_7 = arith.constant 0 : index
    %9 = vector.load %arg4[%c0_6, %c0_7] : memref<128x128xbf16, #tpu.memory_space<vmem>>, vector<128x128xbf16>
    %cst_8 = arith.constant dense<0.000000e+00> : vector<16x128xf32>
    %10 = tpu.matmul %8, %9, %cst_8 {dimension_numbers = #tpu.dot_dimension_numbers<[1], [0], [0], [1], [0, 0, 1, 1], [], []>} : vector<16x128xbf16>, vector<128x128xbf16>, vector<16x128xf32> -> vector<16x128xf32>
    %c0_9 = arith.constant 0 : index
    %c0_10 = arith.constant 0 : index
    %11 = vector.load %arg5[%c0_9, %c0_10] : memref<1x128xf32, #tpu.memory_space<vmem>>, vector<1x128xf32>
    %12 = vector.broadcast %11 : vector<1x128xf32> to vector<16x128xf32>
    %13 = arith.addf %10, %12 : vector<16x128xf32>
    %cst_11 = arith.constant 0.000000e+00 : f32
    %14 = vector.broadcast %cst_11 : f32 to vector<16x128xf32>
    %15 = arith.maximumf %13, %14 : vector<16x128xf32>
    %16 = arith.truncf %15 : vector<16x128xf32> to vector<16x128xbf16>
    %c0_12 = arith.constant 0 : index
    %c0_13 = arith.constant 0 : index
    %17 = vector.load %arg6[%c0_12, %c0_13] : memref<128x128xbf16, #tpu.memory_space<vmem>>, vector<128x128xbf16>
    %cst_14 = arith.constant dense<0.000000e+00> : vector<16x128xf32>
    %18 = tpu.matmul %16, %17, %cst_14 {dimension_numbers = #tpu.dot_dimension_numbers<[1], [0], [0], [1], [0, 0, 1, 1], [], []>} : vector<16x128xbf16>, vector<128x128xbf16>, vector<16x128xf32> -> vector<16x128xf32>
    %c0_15 = arith.constant 0 : index
    %c0_16 = arith.constant 0 : index
    %19 = vector.load %arg7[%c0_15, %c0_16] : memref<1x128xf32, #tpu.memory_space<vmem>>, vector<1x128xf32>
    %20 = vector.broadcast %19 : vector<1x128xf32> to vector<16x128xf32>
    %21 = arith.addf %18, %20 : vector<16x128xf32>
    %cst_17 = arith.constant dense<0xFF800000> : vector<16xf32>
    %22 = vector.multi_reduction <maximumf>, %21, %cst_17 [1] : vector<16x128xf32> to vector<16xf32>
    %23 = vector.shape_cast %22 : vector<16xf32> to vector<16x1xf32>
    %24 = vector.broadcast %23 : vector<16x1xf32> to vector<16x128xf32>
    %25 = arith.subf %21, %24 : vector<16x128xf32>
    %26 = math.exp %25 : vector<16x128xf32>
    %cst_18 = arith.constant dense<0.000000e+00> : vector<16xf32>
    %27 = vector.multi_reduction <add>, %26, %cst_18 [1] : vector<16x128xf32> to vector<16xf32>
    %28 = vector.shape_cast %27 : vector<16xf32> to vector<16x1xf32>
    %29 = tpu.reciprocal %28 {approx = true} : vector<16x1xf32> -> vector<16x1xf32>
    %30 = vector.broadcast %29 : vector<16x1xf32> to vector<16x128xf32>
    %31 = arith.mulf %26, %30 : vector<16x128xf32>
    %32 = arith.truncf %31 : vector<16x128xf32> to vector<16x128xbf16>
    %c0_19 = arith.constant 0 : index
    %c0_20 = arith.constant 0 : index
    %33 = vector.load %arg8[%c0_19, %c0_20] : memref<16x128xbf16, #tpu.memory_space<vmem>>, vector<16x128xbf16>
    tpu.vector_store %arg8[%c0_19, %c0_20], %32 {strides = array<i32>} : memref<16x128xbf16, #tpu.memory_space<vmem>>, vector<16x128xbf16>,
    return
  }
  func.func @transform_0(%arg0: i32) -> (i32, i32) {
    %c0_i32 = arith.constant 0 : i32
    %c0_i32_0 = arith.constant 0 : i32
    return %arg0, %c0_i32 : i32, i32
  }
  func.func @transform_1(%arg0: i32) -> (i32, i32) {
    %c0_i32 = arith.constant 0 : i32
    %c0_i32_0 = arith.constant 0 : i32
    %c0_i32_1 = arith.constant 0 : i32
    return %c0_i32, %c0_i32_0 : i32, i32
  }
  func.func @transform_2(%arg0: i32) -> (i32, i32) {
    %c0_i32 = arith.constant 0 : i32
    %c0_i32_0 = arith.constant 0 : i32
    %c0_i32_1 = arith.constant 0 : i32
    return %c0_i32, %c0_i32_0 : i32, i32
  }
  func.func @transform_3(%arg0: i32) -> (i32, i32) {
    %c0_i32 = arith.constant 0 : i32
    %c0_i32_0 = arith.constant 0 : i32
    %c0_i32_1 = arith.constant 0 : i32
    return %c0_i32, %c0_i32_0 : i32, i32
  }
  func.func @transform_4(%arg0: i32) -> (i32, i32) {
    %c0_i32 = arith.constant 0 : i32
    %c0_i32_0 = arith.constant 0 : i32
    %c0_i32_1 = arith.constant 0 : i32
    return %c0_i32, %c0_i32_0 : i32, i32
  }
  func.func @transform_5(%arg0: i32) -> (i32, i32) {
    %c0_i32 = arith.constant 0 : i32
    %c0_i32_0 = arith.constant 0 : i32
    %c0_i32_1 = arith.constant 0 : i32
    return %c0_i32, %c0_i32_0 : i32, i32
  }
  func.func @transform_6(%arg0: i32) -> (i32, i32) {
    %c0_i32 = arith.constant 0 : i32
    %c0_i32_0 = arith.constant 0 : i32
    %c0_i32_1 = arith.constant 0 : i32
    return %c0_i32, %c0_i32_0 : i32, i32
  }
  func.func @transform_7(%arg0: i32) -> (i32, i32) {
    %c0_i32 = arith.constant 0 : i32
    %c0_i32_0 = arith.constant 0 : i32
    return %arg0, %c0_i32 : i32, i32
  }
}

</mosaic_0001>

<llo_original>
// kernel: mlp_forward.1
$region0: #{mlp_forward.1}
  #allocation0 [shape = 'u32[]', space=smem, size = 0x4, offset = 0x4, fixed_abs, tag = 'smem constant byte address 0x4 - core index']
  #allocation1 [shape = 'u32[144,128]{1,0:T(1,128)}', space=vmem, size = 0x12000, scoped, tag = 'internal scratch']
  %s0 = inlined_call_operand.vmem [shape: bf16[16,128], index: 0, kind: input, shape index: {}]
  %s1 = inlined_call_operand.vmem [shape: bf16[128,128], index: 1, kind: input, shape index: {}]
  %s2 = inlined_call_operand.vmem [shape: f32[1,128], index: 2, kind: input, shape index: {}]
  %s3 = inlined_call_operand.vmem [shape: bf16[128,128], index: 3, kind: input, shape index: {}]
  %s4 = inlined_call_operand.vmem [shape: f32[1,128], index: 4, kind: input, shape index: {}]
  %s5 = inlined_call_operand.vmem [shape: bf16[128,128], index: 5, kind: input, shape index: {}]
  %s6 = inlined_call_operand.vmem [shape: f32[1,128], index: 6, kind: input, shape index: {}]
  %s7 = inlined_call_operand.vmem [shape: bf16[16,128], index: 7, kind: output, shape index: {}]
  %s8 = sld [smem:[#allocation0]]
  $region38: #{mlp_forward.1} parent=0
    _
  %s10 = ssub.s32 1, %s8
  %s11 = scalar_select 0, %s10, %s8
  // Predicated region
  $region2: #{mlp_forward.1} parent=0 // pred_check
    _
  $region3: #{mlp_forward.1} parent=0 // pred_check_branch
    %13 = sbr.rel (0) target = $region5
  $region4: #{mlp_forward.1} parent=0 // pred_region
    _
  $region5: #{mlp_forward.1} parent=0 // pred_fallthru
    _
  // Predicated region
  $region6: #{mlp_forward.1} parent=0 // pred_check
    _
  $region7: #{mlp_forward.1} parent=0 // pred_check_branch
    %15 = sbr.rel (0) target = $region9
  $region8: #{mlp_forward.1} parent=0 // pred_region
    _
  $region9: #{mlp_forward.1} parent=0 // pred_fallthru
    _
  // Predicated region
  $region10: #{mlp_forward.1} parent=0 // pred_check
    _
  $region11: #{mlp_forward.1} parent=0 // pred_check_branch
    %17 = sbr.rel (0) target = $region13
  $region12: #{mlp_forward.1} parent=0 // pred_region
    _
  $region13: #{mlp_forward.1} parent=0 // pred_fallthru
    _
  // Predicated region
  $region14: #{mlp_forward.1} parent=0 // pred_check
    _
  $region15: #{mlp_forward.1} parent=0 // pred_check_branch
    %19 = sbr.rel (0) target = $region17
  $region16: #{mlp_forward.1} parent=0 // pred_region
    _
  $region17: #{mlp_forward.1} parent=0 // pred_fallthru
    _
  // Predicated region
  $region18: #{mlp_forward.1} parent=0 // pred_check
    _
  $region19: #{mlp_forward.1} parent=0 // pred_check_branch
    %21 = sbr.rel (0) target = $region21
  $region20: #{mlp_forward.1} parent=0 // pred_region
    _
  $region21: #{mlp_forward.1} parent=0 // pred_fallthru
    _
  // Predicated region
  $region22: #{mlp_forward.1} parent=0 // pred_check
    _
  $region23: #{mlp_forward.1} parent=0 // pred_check_branch
    %23 = sbr.rel (0) target = $region25
  $region24: #{mlp_forward.1} parent=0 // pred_region
    _
  $region25: #{mlp_forward.1} parent=0 // pred_fallthru
    _
  // Predicated region
  $region26: #{mlp_forward.1} parent=0 // pred_check
    _
  $region27: #{mlp_forward.1} parent=0 // pred_check_branch
    %25 = sbr.rel (0) target = $region29
  $region28: #{mlp_forward.1} parent=0 // pred_region
    _
  $region29: #{mlp_forward.1} parent=0 // pred_fallthru
    _
  %v27 = vld [vmem:[%s0] sm:$0xf]
  %v28 = vld [vmem:[%s0 + $0x4] sm:$0xf]
  %v29 = vld [vmem:[%s1] sm:$0xf]
  %v30 = vld [vmem:[%s1 + $0x4] sm:$0xf]
  %v31 = vld [vmem:[%s1 + $0x8] sm:$0xf]
  %v32 = vld [vmem:[%s1 + $0xc] sm:$0xf]
  %v33 = vld [vmem:[%s1 + $0x10] sm:$0xf]
  %v34 = vld [vmem:[%s1 + $0x14] sm:$0xf]
  %v35 = vld [vmem:[%s1 + $0x18] sm:$0xf]
  %v36 = vld [vmem:[%s1 + $0x1c] sm:$0xf]
  %v37 = vld [vmem:[%s1 + $0x20] sm:$0xf]
  %v38 = vld [vmem:[%s1 + $0x24] sm:$0xf]
  %v39 = vld [vmem:[%s1 + $0x28] sm:$0xf]
  %v40 = vld [vmem:[%s1 + $0x2c] sm:$0xf]
  %v41 = vld [vmem:[%s1 + $0x30] sm:$0xf]
  %v42 = vld [vmem:[%s1 + $0x34] sm:$0xf]
  %v43 = vld [vmem:[%s1 + $0x38] sm:$0xf]
  %v44 = vld [vmem:[%s1 + $0x3c] sm:$0xf]
  %v45 = vld [vmem:[%s2] sm:$0x1]
  %v47 = vlaneseq
  %v48 = vshrl.u32 %v47, 7
  %v49 = vsub.s32 0, %v48
  %v50 = vrot.slane %v45, %v49
  %v54 = vunpack.c.l.b16 %v27
  %v55 = vunpack.c.l.b16 %v28
  %v56 = vpack.c.b16 %v55, %v54
  %v74 = vunpack.c.l.b16 %v29
  %v75 = vunpack.c.l.b16 %v30
  %v76 = vunpack.c.l.b16 %v31
  %v77 = vunpack.c.l.b16 %v32
  %v78 = vunpack.c.l.b16 %v33
  %v79 = vunpack.c.l.b16 %v34
  %v80 = vunpack.c.l.b16 %v35
  %v81 = vunpack.c.l.b16 %v36
  %v82 = vunpack.c.l.b16 %v37
  %v83 = vunpack.c.l.b16 %v38
  %v84 = vunpack.c.l.b16 %v39
  %v85 = vunpack.c.l.b16 %v40
  %v86 = vunpack.c.l.b16 %v41
  %v87 = vunpack.c.l.b16 %v42
  %v88 = vunpack.c.l.b16 %v43
  %v89 = vunpack.c.l.b16 %v44
  %v90 = vpack.c.b16 %v75, %v74
  %v91 = vpack.c.b16 %v77, %v76
  %v92 = vpack.c.b16 %v79, %v78
  %v93 = vpack.c.b16 %v81, %v80
  %v94 = vpack.c.b16 %v83, %v82
  %v95 = vpack.c.b16 %v85, %v84
  %v96 = vpack.c.b16 %v87, %v86
  %v97 = vpack.c.b16 %v89, %v88
  %106 = vmatprep.subr.bf16.mxu0 0
  %107 = vmatpush1.bf16.msra.mxu0 %v97
  %108 = vmatprep.subr.bf16.mxu0 0
  %109 = vmatpush1.bf16.msra.mxu0 %v96
  %110 = vmatprep.subr.bf16.mxu0 0
  %111 = vmatpush1.bf16.msra.mxu0 %v95
  %112 = vmatprep.subr.bf16.mxu0 0
  %113 = vmatpush1.bf16.msra.mxu0 %v94
  %114 = vmatprep.subr.bf16.mxu0 0
  %115 = vmatpush1.bf16.msra.mxu0 %v93
  %116 = vmatprep.subr.bf16.mxu0 0
  %117 = vmatpush1.bf16.msra.mxu0 %v92
  %118 = vmatprep.subr.bf16.mxu0 0
  %119 = vmatpush1.bf16.msra.mxu0 %v91
  %120 = vmatprep.subr.bf16.mxu0 0
  %121 = vmatpush1.bf16.msra.mxu0 %v90
  %122 = vmatprep.subr.bf16.mxu0 0
  %123 = vmatpush2.bf16.msra.mxu0 0
  %124 = vmatprep.subr.bf16.mxu0 0
  %125 = vmatpush2.bf16.msra.mxu0 0
  %126 = vmatprep.subr.bf16.mxu0 0
  %127 = vmatpush2.bf16.msra.mxu0 0
  %128 = vmatprep.subr.bf16.mxu0 0
  %129 = vmatpush2.bf16.msra.mxu0 0
  %130 = vmatprep.subr.bf16.mxu0 0
  %131 = vmatpush2.bf16.msra.mxu0 0
  %132 = vmatprep.subr.bf16.mxu0 0
  %133 = vmatpush2.bf16.msra.mxu0 0
  %134 = vmatprep.subr.bf16.mxu0 0
  %135 = vmatpush2.bf16.msra.mxu0 0
  %136 = vmatprep.subr.bf16.mxu0 0
  %137 = vmatpush2.bf16.msra.mxu0 0
  %138 = vmatprep.mubr.bf16.mxu0 0
  %139 = vmatmul.mubr.bf16.gmra.mxu0 %v56
  %v140 = vpop.f32.mrf.mxu0
  %v141 = vadd.f32 %v50, %v140
  %v142 = vpop.f32.mrf.mxu0
  %v143 = vpop.f32.mrf.mxu0
  %v144 = vadd.f32 %v50, %v143
  %v145 = vpop.f32.mrf.mxu0
  %146 = vdwg.mxu0
  %v147 = vmax.f32 %v141, 0.0
  %v148 = vmax.f32 %v144, 0.0
  %v149 = vpack.c.bf16 %v148, %v147
  %v150 = vld [vmem:[%s3] sm:$0xf]
  %v151 = vld [vmem:[%s3 + $0x4] sm:$0xf]
  %v152 = vld [vmem:[%s3 + $0x8] sm:$0xf]
  %v153 = vld [vmem:[%s3 + $0xc] sm:$0xf]
  %v154 = vld [vmem:[%s3 + $0x10] sm:$0xf]
  %v155 = vld [vmem:[%s3 + $0x14] sm:$0xf]
  %v156 = vld [vmem:[%s3 + $0x18] sm:$0xf]
  %v157 = vld [vmem:[%s3 + $0x1c] sm:$0xf]
  %v158 = vld [vmem:[%s3 + $0x20] sm:$0xf]
  %v159 = vld [vmem:[%s3 + $0x24] sm:$0xf]
  %v160 = vld [vmem:[%s3 + $0x28] sm:$0xf]
  %v161 = vld [vmem:[%s3 + $0x2c] sm:$0xf]
  %v162 = vld [vmem:[%s3 + $0x30] sm:$0xf]
  %v163 = vld [vmem:[%s3 + $0x34] sm:$0xf]
  %v164 = vld [vmem:[%s3 + $0x38] sm:$0xf]
  %v165 = vld [vmem:[%s3 + $0x3c] sm:$0xf]
  %v166 = vld [vmem:[%s4] sm:$0x1]
  %v168 = vlaneseq
  %v169 = vshrl.u32 %v168, 7
  %v170 = vsub.s32 0, %v169
  %v171 = vrot.slane %v166, %v170
  %v189 = vunpack.c.l.b16 %v150
  %v190 = vunpack.c.l.b16 %v151
  %v191 = vunpack.c.l.b16 %v152
  %v192 = vunpack.c.l.b16 %v153
  %v193 = vunpack.c.l.b16 %v154
  %v194 = vunpack.c.l.b16 %v155
  %v195 = vunpack.c.l.b16 %v156
  %v196 = vunpack.c.l.b16 %v157
  %v197 = vunpack.c.l.b16 %v158
  %v198 = vunpack.c.l.b16 %v159
  %v199 = vunpack.c.l.b16 %v160
  %v200 = vunpack.c.l.b16 %v161
  %v201 = vunpack.c.l.b16 %v162
  %v202 = vunpack.c.l.b16 %v163
  %v203 = vunpack.c.l.b16 %v164
  %v204 = vunpack.c.l.b16 %v165
  %v205 = vpack.c.b16 %v190, %v189
  %v206 = vpack.c.b16 %v192, %v191
  %v207 = vpack.c.b16 %v194, %v193
  %v208 = vpack.c.b16 %v196, %v195
  %v209 = vpack.c.b16 %v198, %v197
  %v210 = vpack.c.b16 %v200, %v199
  %v211 = vpack.c.b16 %v202, %v201
  %v212 = vpack.c.b16 %v204, %v203
  %221 = vmatprep.subr.bf16.mxu0 0
  %222 = vmatpush1.bf16.msra.mxu0 %v212
  %223 = vmatprep.subr.bf16.mxu0 0
  %224 = vmatpush1.bf16.msra.mxu0 %v211
  %225 = vmatprep.subr.bf16.mxu0 0
  %226 = vmatpush1.bf16.msra.mxu0 %v210
  %227 = vmatprep.subr.bf16.mxu0 0
  %228 = vmatpush1.bf16.msra.mxu0 %v209
  %229 = vmatprep.subr.bf16.mxu0 0
  %230 = vmatpush1.bf16.msra.mxu0 %v208
  %231 = vmatprep.subr.bf16.mxu0 0
  %232 = vmatpush1.bf16.msra.mxu0 %v207
  %233 = vmatprep.subr.bf16.mxu0 0
  %234 = vmatpush1.bf16.msra.mxu0 %v206
  %235 = vmatprep.subr.bf16.mxu0 0
  %236 = vmatpush1.bf16.msra.mxu0 %v205
  %237 = vmatprep.subr.bf16.mxu0 0
  %238 = vmatpush2.bf16.msra.mxu0 0
  %239 = vmatprep.subr.bf16.mxu0 0
  %240 = vmatpush2.bf16.msra.mxu0 0
  %241 = vmatprep.subr.bf16.mxu0 0
  %242 = vmatpush2.bf16.msra.mxu0 0
  %243 = vmatprep.subr.bf16.mxu0 0
  %244 = vmatpush2.bf16.msra.mxu0 0
  %245 = vmatprep.subr.bf16.mxu0 0
  %246 = vmatpush2.bf16.msra.mxu0 0
  %247 = vmatprep.subr.bf16.mxu0 0
  %248 = vmatpush2.bf16.msra.mxu0 0
  %249 = vmatprep.subr.bf16.mxu0 0
  %250 = vmatpush2.bf16.msra.mxu0 0
  %251 = vmatprep.subr.bf16.mxu0 0
  %252 = vmatpush2.bf16.msra.mxu0 0
  %253 = vmatprep.mubr.bf16.mxu0 0
  %254 = vmatmul.mubr.bf16.gmra.mxu0 %v149
  %v255 = vpop.f32.mrf.mxu0
  %v256 = vadd.f32 %v171, %v255
  %v257 = vpop.f32.mrf.mxu0
  %v258 = vpop.f32.mrf.mxu0
  %v259 = vadd.f32 %v171, %v258
  %v260 = vpop.f32.mrf.mxu0
  %261 = vdwg.mxu0
  %v262 = vmax.f32 %v256, 0.0
  %v263 = vmax.f32 %v259, 0.0
  %v264 = vpack.c.bf16 %v263, %v262
  %v265 = vld [vmem:[%s5] sm:$0xf]
  %v266 = vld [vmem:[%s5 + $0x4] sm:$0xf]
  %v267 = vld [vmem:[%s5 + $0x8] sm:$0xf]
  %v268 = vld [vmem:[%s5 + $0xc] sm:$0xf]
  %v269 = vld [vmem:[%s5 + $0x10] sm:$0xf]
  %v270 = vld [vmem:[%s5 + $0x14] sm:$0xf]
  %v271 = vld [vmem:[%s5 + $0x18] sm:$0xf]
  %v272 = vld [vmem:[%s5 + $0x1c] sm:$0xf]
  %v273 = vld [vmem:[%s5 + $0x20] sm:$0xf]
  %v274 = vld [vmem:[%s5 + $0x24] sm:$0xf]
  %v275 = vld [vmem:[%s5 + $0x28] sm:$0xf]
  %v276 = vld [vmem:[%s5 + $0x2c] sm:$0xf]
  %v277 = vld [vmem:[%s5 + $0x30] sm:$0xf]
  %v278 = vld [vmem:[%s5 + $0x34] sm:$0xf]
  %v279 = vld [vmem:[%s5 + $0x38] sm:$0xf]
  %v280 = vld [vmem:[%s5 + $0x3c] sm:$0xf]
  %v281 = vld [vmem:[%s6] sm:$0x1]
  %v283 = vlaneseq
  %v284 = vshrl.u32 %v283, 7
  %v285 = vsub.s32 0, %v284
  %v286 = vrot.slane %v281, %v285
  %v304 = vunpack.c.l.b16 %v265
  %v305 = vunpack.c.l.b16 %v266
  %v306 = vunpack.c.l.b16 %v267
  %v307 = vunpack.c.l.b16 %v268
  %v308 = vunpack.c.l.b16 %v269
  %v309 = vunpack.c.l.b16 %v270
  %v310 = vunpack.c.l.b16 %v271
  %v311 = vunpack.c.l.b16 %v272
  %v312 = vunpack.c.l.b16 %v273
  %v313 = vunpack.c.l.b16 %v274
  %v314 = vunpack.c.l.b16 %v275
  %v315 = vunpack.c.l.b16 %v276
  %v316 = vunpack.c.l.b16 %v277
  %v317 = vunpack.c.l.b16 %v278
  %v318 = vunpack.c.l.b16 %v279
  %v319 = vunpack.c.l.b16 %v280
  %v320 = vpack.c.b16 %v305, %v304
  %v321 = vpack.c.b16 %v307, %v306
  %v322 = vpack.c.b16 %v309, %v308
  %v323 = vpack.c.b16 %v311, %v310
  %v324 = vpack.c.b16 %v313, %v312
  %v325 = vpack.c.b16 %v315, %v314
  %v326 = vpack.c.b16 %v317, %v316
  %v327 = vpack.c.b16 %v319, %v318
  %336 = vmatprep.subr.bf16.mxu0 0
  %337 = vmatpush1.bf16.msra.mxu0 %v327
  %338 = vmatprep.subr.bf16.mxu0 0
  %339 = vmatpush1.bf16.msra.mxu0 %v326
  %340 = vmatprep.subr.bf16.mxu0 0
  %341 = vmatpush1.bf16.msra.mxu0 %v325
  %342 = vmatprep.subr.bf16.mxu0 0
  %343 = vmatpush1.bf16.msra.mxu0 %v324
  %344 = vmatprep.subr.bf16.mxu0 0
  %345 = vmatpush1.bf16.msra.mxu0 %v323
  %346 = vmatprep.subr.bf16.mxu0 0
  %347 = vmatpush1.bf16.msra.mxu0 %v322
  %348 = vmatprep.subr.bf16.mxu0 0
  %349 = vmatpush1.bf16.msra.mxu0 %v321
  %350 = vmatprep.subr.bf16.mxu0 0
  %351 = vmatpush1.bf16.msra.mxu0 %v320
  %352 = vmatprep.subr.bf16.mxu0 0
  %353 = vmatpush2.bf16.msra.mxu0 0
  %354 = vmatprep.subr.bf16.mxu0 0
  %355 = vmatpush2.bf16.msra.mxu0 0
  %356 = vmatprep.subr.bf16.mxu0 0
  %357 = vmatpush2.bf16.msra.mxu0 0
  %358 = vmatprep.subr.bf16.mxu0 0
  %359 = vmatpush2.bf16.msra.mxu0 0
  %360 = vmatprep.subr.bf16.mxu0 0
  %361 = vmatpush2.bf16.msra.mxu0 0
  %362 = vmatprep.subr.bf16.mxu0 0
  %363 = vmatpush2.bf16.msra.mxu0 0
  %364 = vmatprep.subr.bf16.mxu0 0
  %365 = vmatpush2.bf16.msra.mxu0 0
  %366 = vmatprep.subr.bf16.mxu0 0
  %367 = vmatpush2.bf16.msra.mxu0 0
  %368 = vmatprep.mubr.bf16.mxu0 0
  %369 = vmatmul.mubr.bf16.gmra.mxu0 %v264
  %v370 = vpop.f32.mrf.mxu0
  %v371 = vadd.f32 %v286, %v370
  %v372 = vpop.f32.mrf.mxu0
  %v373 = vpop.f32.mrf.mxu0
  %v374 = vadd.f32 %v286, %v373
  %v375 = vpop.f32.mrf.mxu0
  %376 = vdwg.mxu0
  %377 = vmax.xlane.f32.xlu0 %v371
  %v378 = vpop.xlane.xlu0 %377
  %379 = vmax.xlane.f32.xlu0 %v374
  %v380 = vpop.xlane.xlu0 %379
  %v381 = vsub.f32 %v371, %v378
  %v382 = vsub.f32 %v374, %v380
  %v383 = vmul.f32 %v381, 1.442695
  %v384 = vpow.pop %v383
  %v385 = vmul.f32 %v382, 1.442695
  %v386 = vpow.pop %v385
  %387 = vadd.xlane.f32.xlu0 %v384
  %v388 = vpop.xlane.xlu0 %387
  %389 = vadd.xlane.f32.xlu0 %v386
  %v390 = vpop.xlane.xlu0 %389
  %v391 = vrcp.pop %v388
  %v392 = vrcp.pop %v390
  %v393 = vmul.f32 %v384, %v391
  %v394 = vmul.f32 %v386, %v392
  %v395 = vpack.c.bf16 %v394, %v393
  %v397 = vunpack.c.l.b16 %v395
  %v398 = vunpack.c.h.b16 %v395
  %v399 = vpack.c.b16 %v397, %v397
  %v400 = vpack.c.b16 %v398, %v398
  %403 = vst [vmem:[%s7] sm:$0xf] %v399
  %404 = vst [vmem:[%s7 + $0x4] sm:$0xf] %v400
  // Predicated region
  $region30: #{mlp_forward.1} parent=0 // pred_check
    _
  $region31: #{mlp_forward.1} parent=0 // pred_check_branch
    %406 = sbr.rel (0) target = $region33
  $region32: #{mlp_forward.1} parent=0 // pred_region
    _
  $region33: #{mlp_forward.1} parent=0 // pred_fallthru
    _
  // Predicated region
  $region34: #{mlp_forward.1} parent=0 // pred_check
    _
  $region35: #{mlp_forward.1} parent=0 // pred_check_branch
    %408 = sbr.rel (0) target = $region37
  $region36: #{mlp_forward.1} parent=0 // pred_region
    _
  $region37: #{mlp_forward.1} parent=0 // pred_fallthru
    _

</llo_original>
